<compile_context>
chip_gen: v7x
topology: tpu7x:2x2x1
jax: 0.10.0
libtpu: 0.0.40
codegen_flags: <defaults>
</compile_context>

<pallas_src>
import functools
import math

import jax
import jax.numpy as jnp
from jax.experimental import pallas as pl
from jax.experimental.pallas import tpu as pltpu

EPS = 1e-6  # used by the PyTorch-exact reference check (see LSE note above)


def _vmem_capacity_bytes() -> int:
    """Physical VMEM per core, with a conservative fallback (v7x per-TC)."""
    try:
        info = pltpu.get_tpu_info()
        for attr in ("vmem_capacity_bytes", "vmem_bytes"):
            cap = getattr(info, attr, None)
            if cap:
                return int(cap)
    except Exception:
        pass
    return 64 << 20


def _entmin_kernel(y_ref, out_ref, *, n_rows: int, block_rows: int,
                   mask_rows: bool):
    """One row-tile: out <- partial sum over valid rows of sum_c p*log(p)."""
    y = y_ref[...].astype(jnp.float32)                  # (TN, C), f32 compute
    m = jnp.max(y, axis=-1, keepdims=True)              # (TN, 1)
    s = y - m
    e = jnp.exp(s)                                      # 1 EUP op per element
    z = jnp.sum(e, axis=-1, keepdims=True)              # (TN, 1)

    # Per-row ops below are O(TN), negligible next to the O(TN*C) stream.
    inv_z = pl.reciprocal(z, approx=False)
    # sum_c p*log p == (sum_c e*(y-m)) * (1/Z) - log Z     (log-sum-exp form)
    row = jnp.sum(e * s, axis=-1, keepdims=True) * inv_z - jnp.log(z)  # (TN,1)

    if mask_rows:
        # Mask rows past the true batch size (padded last tile may hold garbage).
        tile = pl.program_id(0)
        rid = tile * block_rows + jax.lax.broadcasted_iota(
            jnp.int32, (block_rows, 1), 0)
        row = jnp.where(rid < n_rows, row, 0.0)

    part = jnp.sum(row)                                  # scalar partial sum
    # Lane-dense (1, 1, 128) slab -> unmasked vector store; wrapper reads [0,0].
    out_ref[...] = jnp.full((1, 1, 128), part, dtype=jnp.float32)


def _pick_block_rows(n: int, c: int, dtype) -> int:
    """Rows per tile, sized against the real (lane-padded) VMEM working set."""
    itemsize = jnp.dtype(dtype).itemsize
    mult = 8 if itemsize >= 4 else 16           # f32 sublane 8, bf16 packs 16
    c_pad = -(-c // 128) * 128                  # lane-padded class dim
    vmem_cap = _vmem_capacity_bytes()
    # Working-set target: leave headroom under physical VMEM (48 MiB fits v7x's
    # 64 MiB per-TC and is far under v5e/v6e's 128 MiB once the limit is raised).
    target = min(48 << 20, (vmem_cap * 3) // 4)
    # Per-row cost: 2x double-buffered input + ~3x f32 temporaries (cast/e/e*s).
    per_row = 2 * c_pad * itemsize + 3 * c_pad * 4
    rows = max(mult, target // per_row)
    rows = (rows // mult) * mult
    n_pad = -(-n // mult) * mult
    rows = min(rows, n_pad)
    # Guarantee >= 2 grid tiles when possible so the "parallel" axis actually
    # shards across both v7x TensorCores (neutral on single-TC v5e/v6e).
    if rows >= n_pad and n_pad >= 2 * mult:
        rows = -(-(n_pad // 2) // mult) * mult
    return max(mult, rows)


def entropy_minimization(y_s, y_s_adv, y_t, y_t_adv, *, block_rows=None):
    """Pallas TPU forward of EntropyMinimization (multi_label=False, eps=1e-6)."""
    del y_s, y_s_adv, y_t_adv                  # unused by the loss, as in PyTorch
    n, c = y_t.shape
    itemsize = jnp.dtype(y_t.dtype).itemsize
    if block_rows is None:
        block_rows = _pick_block_rows(n, c, y_t.dtype)
    num_tiles = pl.cdiv(n, block_rows)
    mask_rows = (num_tiles * block_rows != n)

    # Explicit VMEM limit: estimate the footprint from the chosen tile (using
    # the lane-padded class dim) + margin, clamped to ~90% of physical VMEM.
    c_pad = -(-c // 128) * 128
    vmem_cap = _vmem_capacity_bytes()
    est = block_rows * c_pad * (2 * itemsize + 3 * 4) + (1 << 20)
    vmem_limit = int(min((vmem_cap * 9) // 10, max(32 << 20, est + (8 << 20))))

    kernel = functools.partial(_entmin_kernel, n_rows=n, block_rows=block_rows,
                               mask_rows=mask_rows)

    partials = pl.pallas_call(
        kernel,
        out_shape=jax.ShapeDtypeStruct((num_tiles, 1, 128), jnp.float32),
        grid=(num_tiles,),
        in_specs=[pl.BlockSpec((block_rows, c), lambda i: (i, 0))],
        out_specs=pl.BlockSpec((1, 1, 128), lambda i: (i, 0, 0)),
        compiler_params=pltpu.CompilerParams(
            dimension_semantics=("parallel",),
            vmem_limit_bytes=vmem_limit),
    )(y_t)

    # Tiny final reduction + global normalization in plain JAX; divide by the
    # TRUE global N and log(C), never the tile-local shape.
    return jnp.sum(partials[:, 0, 0]) / (n * math.log(c))


if __name__ == "__main__":
    key = jax.random.PRNGKey(0)
    k0, k1, k2, k3 = jax.random.split(key, 4)

    # 1) Small batch of class logits; block_rows=16 -> 3 tiles (16/16/8 valid
    #    rows) so the grid, pipelining and last-tile masking are all exercised.
    N, C = 40, 32
    y_s = jax.random.normal(k0, (N, C), jnp.float32)
    y_s_adv = jax.random.normal(k1, (N, C), jnp.float32)
    y_t = jax.random.normal(k2, (N, C), jnp.float32)
    y_t_adv = jax.random.normal(k3, (N, C), jnp.float32)

    loss = entropy_minimization(y_s, y_s_adv, y_t, y_t_adv, block_rows=16)
    jax.block_until_ready(loss)

    logp = jax.nn.log_softmax(y_t, axis=1)
    p = jnp.exp(logp)
    ref_lse = jnp.mean(jnp.sum(p * logp, axis=-1)) / math.log(C)
    ref_torch = jnp.mean(jnp.sum(p * jnp.log(p + EPS), axis=-1)) / math.log(C)

    # Tight check vs the mathematically equivalent (eps-free) form.
    assert jnp.allclose(loss, ref_lse, atol=1e-5, rtol=1e-5), (loss, ref_lse)
    # PyTorch adds +eps inside the log; the deviation is bounded by C*eps/log(C).
    eps_bound = C * EPS / math.log(C) + 1e-5
    assert jnp.allclose(loss, ref_torch, atol=eps_bound, rtol=1e-5), (loss, ref_torch)

    # 2) bf16 logits, even multi-tile split (128-row tiles).
    N2, C2 = 256, 128
    y2 = jax.random.normal(k3, (N2, C2), jnp.float32).astype(jnp.bfloat16)
    loss2 = entropy_minimization(y2, y2, y2, y2, block_rows=128)
    jax.block_until_ready(loss2)
    logp2 = jax.nn.log_softmax(y2.astype(jnp.float32), axis=1)
    p2 = jnp.exp(logp2)
    ref2 = jnp.mean(jnp.sum(p2 * logp2, axis=-1)) / math.log(C2)
    assert jnp.allclose(loss2, ref2, atol=1e-5, rtol=1e-5), (loss2, ref2)

    # 3) Auto tile picker: N small enough that the min-2-tiles rule kicks in.
    N3, C3 = 64, 32
    y3 = jax.random.normal(k1, (N3, C3), jnp.float32)
    loss3 = entropy_minimization(y3, y3, y3, y3)   # block_rows picked internally
    jax.block_until_ready(loss3)
    logp3 = jax.nn.log_softmax(y3, axis=1)
    p3 = jnp.exp(logp3)
    ref3 = jnp.mean(jnp.sum(p3 * logp3, axis=-1)) / math.log(C3)
    assert jnp.allclose(loss3, ref3, atol=1e-5, rtol=1e-5), (loss3, ref3)

    print("KERNEL_OK")
</pallas_src>

<mosaic_0001>
module attributes {stable_mosaic.version = 11 : i64} {
  func.func @_entmin_kernel(%arg0: i32, %arg1: memref<16x32xf32, #tpu.memory_space<vmem>>, %arg2: memref<1x1x128xf32, #tpu.memory_space<vmem>>) attributes {dimension_semantics = [#tpu.dimension_semantics<parallel>], iteration_bounds = array<i64: 3>, scalar_prefetch = 0 : i64, scratch_operands = 0 : i64, tpu.core_type = #tpu.core_type<tc>, window_params = [{transform_indices = @transform_0, window_bounds = array<i64: 16, 32>}, {transform_indices = @transform_1, window_bounds = array<i64: 1, 1, 128>}]} {
    %c0 = arith.constant 0 : index
    %c0_0 = arith.constant 0 : index
    %0 = vector.load %arg1[%c0, %c0_0] : memref<16x32xf32, #tpu.memory_space<vmem>>, vector<16x32xf32>
    %cst = arith.constant dense<0xFF800000> : vector<16xf32>
    %1 = vector.multi_reduction <maximumf>, %0, %cst [1] : vector<16x32xf32> to vector<16xf32>
    %2 = vector.shape_cast %1 : vector<16xf32> to vector<16x1xf32>
    %3 = vector.broadcast %2 : vector<16x1xf32> to vector<16x32xf32>
    %4 = arith.subf %0, %3 : vector<16x32xf32>
    %5 = math.exp %4 : vector<16x32xf32>
    %cst_1 = arith.constant dense<0.000000e+00> : vector<16xf32>
    %6 = vector.multi_reduction <add>, %5, %cst_1 [1] : vector<16x32xf32> to vector<16xf32>
    %7 = vector.shape_cast %6 : vector<16xf32> to vector<16x1xf32>
    %8 = tpu.reciprocal %7 : vector<16x1xf32> -> vector<16x1xf32>
    %9 = arith.mulf %5, %4 : vector<16x32xf32>
    %cst_2 = arith.constant dense<0.000000e+00> : vector<16xf32>
    %10 = vector.multi_reduction <add>, %9, %cst_2 [1] : vector<16x32xf32> to vector<16xf32>
    %11 = vector.shape_cast %10 : vector<16xf32> to vector<16x1xf32>
    %12 = arith.mulf %11, %8 : vector<16x1xf32>
    %13 = math.log %7 : vector<16x1xf32>
    %14 = arith.subf %12, %13 : vector<16x1xf32>
    %c16_i32 = arith.constant 16 : i32
    %15 = arith.muli %arg0, %c16_i32 : i32
    %16 = tpu.iota {dimensions = array<i32: 0>} : vector<16x1xi32>
    %17 = vector.broadcast %15 : i32 to vector<16x1xi32>
    %18 = arith.addi %17, %16 : vector<16x1xi32>
    %c40_i32 = arith.constant 40 : i32
    %19 = vector.broadcast %c40_i32 : i32 to vector<16x1xi32>
    %20 = arith.cmpi slt, %18, %19 : vector<16x1xi32>
    %cst_3 = arith.constant 0.000000e+00 : f32
    %21 = vector.broadcast %cst_3 : f32 to vector<16x1xf32>
    %22 = arith.select %20, %14, %21 : vector<16x1xi1>, vector<16x1xf32>
    %23 = vector.shape_cast %22 : vector<16x1xf32> to vector<1x16x1xf32>
    %cst_4 = arith.constant dense<0.000000e+00> : vector<1xf32>
    %24 = vector.multi_reduction <add>, %23, %cst_4 [1, 2] : vector<1x16x1xf32> to vector<1xf32>
    %25 = vector.shape_cast %24 : vector<1xf32> to vector<1x1x1xf32>
    %26 = vector.extract %25[0, 0, 0] : f32 from vector<1x1x1xf32>
    %27 = vector.broadcast %26 : f32 to vector<1x1x128xf32>
    %c0_5 = arith.constant 0 : index
    %c0_6 = arith.constant 0 : index
    %c0_7 = arith.constant 0 : index
    %28 = vector.load %arg2[%c0_5, %c0_6, %c0_7] : memref<1x1x128xf32, #tpu.memory_space<vmem>>, vector<1x1x128xf32>
    tpu.vector_store %arg2[%c0_5, %c0_6, %c0_7], %27 {strides = array<i32>} : memref<1x1x128xf32, #tpu.memory_space<vmem>>, vector<1x1x128xf32>,
    return
  }
  func.func @transform_0(%arg0: i32) -> (i32, i32) {
    %c0_i32 = arith.constant 0 : i32
    %c0_i32_0 = arith.constant 0 : i32
    return %arg0, %c0_i32 : i32, i32
  }
  func.func @transform_1(%arg0: i32) -> (i32, i32, i32) {
    %c0_i32 = arith.constant 0 : i32
    %c0_i32_0 = arith.constant 0 : i32
    %c0_i32_1 = arith.constant 0 : i32
    return %arg0, %c0_i32, %c0_i32_0 : i32, i32, i32
  }
}

</mosaic_0001>

<llo_original>
// kernel: tpu_custom_call.1
$region0: #{tpu_custom_call.1}
  #allocation0 [shape = 'u32[]', space=smem, size = 0x4, offset = 0x4, fixed_abs, tag = 'smem constant byte address 0x4 - core index']
  #allocation1 [shape = 'u32[144,128]{1,0:T(1,128)}', space=vmem, size = 0x12000, scoped, tag = 'internal scratch']
  %s0 = inlined_call_operand.vmem [shape: f32[40,32], index: 0, kind: input, shape index: {}]
  %s1 = inlined_call_operand.hbm [shape: f32[3,1,128], index: 1, kind: output, shape index: {}]
  %s2 = sld [smem:[#allocation0]]
  $region37: #{tpu_custom_call.1} parent=0
    _
  %s4 = ssub.s32 1, %s2
  %s5 = scalar_select 0, %s4, %s2
  $region1: #{tpu_custom_call.1} parent=0
    #allocation2 [shape = 'u8[1024]{0}', space=vmem, size = 0x400, scoped, tag = 'output window, operand 0']
    #allocation3 [shape = 's32[2]{0}', space=sflag, size = 0x8, scoped, tag = 'scoped memory for tpu_custom_call.1']
    %6 = vsyncpa [#allocation3], 0
    %s7 = scalar_lea.sflag [#allocation3], 1
    %8 = vsyncpa %s7, 0
    loop: start=0, step=1, limit=5
    $region2: #{tpu_custom_call.1} parent=1 // loop_pre_header
      _
    $region3: #{tpu_custom_call.1} parent=1 // loop_header
      %s10 = sphi 0, %s14
      %p11 = scmp.ge.s32.totalorder %s10, 5
      %s20 = sphi 0, %s22
      %s23 = sphi 0, %s20
      %s24 = sphi 0, %s23
      %s40 = sphi 0, %s24
      %s46 = sphi 0, %s48
      %s49 = sphi 0, %s46
      %s50 = sphi 0, %s49
      %s66 = sphi 0, %s50
    $region4: #{tpu_custom_call.1} parent=1 // loop_header_branch
      %13 = sbr.rel (%p11) target = $region8
    $region5: #{tpu_custom_call.1} parent=1 // loop_body
      %s15 = ssub.s32 %s10, 1
      %s16 = ssub.s32 %s10, 2
      %s17 = sadd.s32 %s10, 1
      %s18 = ssub.s32 %s10, %s17
      %p19 = scmp.eq.s32.totalorder %s18, 0
      %s21 = sadd.s32 %s20, 1
      %s22 = scalar_select %p19, %s20, %s21
      %p25 = pneg %p19
      %p26 = scmp.eq.s32.totalorder %s10, 2
      %p27 = por %p25, %p26
      %p28 = scmp.ne.s32.totalorder %s20, %s23
      %p29 = scmp.eq.s32.totalorder %s10, 0
      %p30 = por %p28, %p29
      %p31 = scmp.ne.s32.totalorder %s20, %s23
      %p32 = scmp.eq.s32.totalorder %s15, 2
      %p33 = por %p31, %p32
      %p34 = scmp.ne.s32.totalorder %s23, %s24
      %p35 = scmp.eq.s32.totalorder %s15, 0
      %p36 = por %p34, %p35
      %p37 = scmp.ne.s32.totalorder %s23, %s24
      %p38 = scmp.eq.s32.totalorder %s16, 2
      %p39 = por %p37, %p38
      %p41 = scmp.ne.s32.totalorder %s24, %s40
      %p42 = scmp.eq.s32.totalorder %s16, 0
      %p43 = por %p41, %p42
      %s44 = ssub.s32 %s10, %s17
      %p45 = scmp.eq.s32.totalorder %s44, 0
      %s47 = sadd.s32 %s46, 1
      %s48 = scalar_select %p45, %s46, %s47
      %p51 = pneg %p45
      %p52 = scmp.eq.s32.totalorder %s10, 2
      %p53 = por %p51, %p52
      %p54 = scmp.ne.s32.totalorder %s46, %s49
      %p55 = scmp.eq.s32.totalorder %s10, 0
      %p56 = por %p54, %p55
      %p57 = scmp.ne.s32.totalorder %s46, %s49
      %p58 = scmp.eq.s32.totalorder %s15, 2
      %p59 = por %p57, %p58
      %p60 = scmp.ne.s32.totalorder %s49, %s50
      %p61 = scmp.eq.s32.totalorder %s15, 0
      %p62 = por %p60, %p61
      %p63 = scmp.ne.s32.totalorder %s49, %s50
      %p64 = scmp.eq.s32.totalorder %s16, 2
      %p65 = por %p63, %p64
      %p67 = scmp.ne.s32.totalorder %s50, %s66
      %p68 = scmp.eq.s32.totalorder %s16, 0
      %p69 = por %p67, %p68
      %p70 = scmp.le.s32.totalorder 1, %s10
      %p71 = scmp.lt.s32.totalorder %s10, 4
      %p72 = pnand %p70, %p71
      %p73 = pneg %p72
      // Predicated region
      $region9: #{tpu_custom_call.1} parent=5 // pred_check
        _
      $region10: #{tpu_custom_call.1} parent=5 // pred_check_branch
        %75 = sbr.rel (%p72) target = $region12
      $region11: #{tpu_custom_call.1} parent=5 // pred_region
        %s76 = ssub.s32 %s10, 1
      $region12: #{tpu_custom_call.1} parent=5 // pred_fallthru
        _
      %p77 = scmp.lt.s32.totalorder %s10, 3
      // Predicated region
      $region13: #{tpu_custom_call.1} parent=5 // pred_check
        %p78 = pneg %p77
      $region14: #{tpu_custom_call.1} parent=5 // pred_check_branch
        %80 = sbr.rel (%p78) target = $region16
      $region15: #{tpu_custom_call.1} parent=5 // pred_region
        // Predicated region
        $region17: #{tpu_custom_call.1} parent=15 // pred_check
          %p81 = pneg %p30
        $region18: #{tpu_custom_call.1} parent=15 // pred_check_branch
          %83 = sbr.rel (%p81) target = $region20
        $region19: #{tpu_custom_call.1} parent=15 // pred_region
          %s84 = smul.u32 2, %s10
          %s85 = ssub.s32 5, %s84
          %p86 = scmp.lt.s32.totalorder %s85, 2
          %s87 = scalar_select %p86, %s85, 2
          %s88 = smul.u32 128, %s87
          %p89 = scmp.lt.s32.totalorder %s84, 4
          %s90 = scalar_select %p89, %s84, 4
          %s91 = smul.addr %s90, 8
          %s92 = scalar_lea.vmem %s0, %s91
          %s93 = smul.u32 2, %s10
          %s94 = ssub.s32 5, %s93
          %p95 = scmp.lt.s32.totalorder %s94, 2
          %s96 = scalar_select %p95, %s94, 2
          %s97 = smul.u32 128, %s96
        $region20: #{tpu_custom_call.1} parent=15 // pred_fallthru
          _
      $region16: #{tpu_custom_call.1} parent=5 // pred_fallthru
        _
      %p98 = scmp.le.s32.totalorder 1, %s10
      %p99 = scmp.lt.s32.totalorder %s10, 4
      %p100 = pnand %p98, %p99
      %p101 = pneg %p100
      // Predicated region
      $region21: #{tpu_custom_call.1} parent=5 // pred_check
        _
      $region22: #{tpu_custom_call.1} parent=5 // pred_check_branch
        %103 = sbr.rel (%p100) target = $region24
      $region23: #{tpu_custom_call.1} parent=5 // pred_region
        %s104 = ssub.s32 %s10, 1
        %s105 = smul.u32 2, %s15
        %s106 = ssub.s32 5, %s105
        %p107 = scmp.lt.s32.totalorder %s106, 2
        %s108 = scalar_select %p107, %s106, 2
        %s109 = smul.u32 128, %s108
        %p110 = scmp.lt.s32.totalorder %s105, 4
        %s111 = scalar_select %p110, %s105, 4
        %s112 = smul.addr %s111, 8
        %s113 = scalar_lea.vmem %s0, %s112
        %p114 = pneg %p36
        %p115 = pneg %p33
        %p116 = pneg %p62
        %p117 = pneg %p59
        %s118 = sand.u32 %s49, 1
        %s119 = scalar_lea.sflag [#allocation3], %s118
        %s120 = sand.u32 %s49, 1
        %s121 = scalar_lea.vmem [#allocation2], %s120
        %s122 = smul.u32 2, %s15
        %s123 = ssub.s32 5, %s122
        %p124 = scmp.lt.s32.totalorder %s123, 2
        %s125 = scalar_select %p124, %s123, 2
        %s126 = smul.u32 128, %s125
        %p127 = scmp.lt.s32.totalorder %s122, 4
        %s128 = scalar_select %p127, %s122, 4
        %s129 = smul.addr %s128, 8
        %s130 = scalar_lea.vmem %s0, %s129
        %s131 = smul.u32 2, %s15
        %s132 = ssub.s32 5, %s131
        %p133 = scmp.lt.s32.totalorder %s132, 2
        %s134 = scalar_select %p133, %s132, 2
        %s135 = smul.u32 128, %s134
        %v136 = vld [vmem:[%s130] sm:$0xff]
        %v137 = vld [vmem:[%s130 + $0x8] sm:$0xff]
        %vm138 = vcmask 261120
        %v139 = vsel %vm138, %v136, -inf
        %140 = vmax.xlane.f32.xlu0 %v139
        %v141 = vpop.xlane.xlu0 %140
        %v142 = vsel %vm138, %v137, -inf
        %143 = vmax.xlane.f32.xlu0 %v142
        %v144 = vpop.xlane.xlu0 %143
        %v145 = vsub.f32 %v136, %v141
        %v146 = vsub.f32 %v137, %v144
        %v147 = vmul.f32 %v145, 1.442695
        %v148 = vpow.pop %v147
        %v149 = vmul.f32 %v146, 1.442695
        %v150 = vpow.pop %v149
        %v151 = vsel %vm138, %v148, 0.0
        %152 = vadd.xlane.f32.xlu0 %v151
        %v153 = vpop.xlane.xlu0 %152
        %v154 = vsel %vm138, %v150, 0.0
        %155 = vadd.xlane.f32.xlu0 %v154
        %v156 = vpop.xlane.xlu0 %155
        %v157 = vrcp.pop %v153
        %v158 = vrcp.pop %v156
        %v159 = vmul.f32 %v148, %v145
        %v160 = vmul.f32 %v150, %v146
        %v161 = vsel %vm138, %v159, 0.0
        %162 = vadd.xlane.f32.xlu0 %v161
        %v163 = vpop.xlane.xlu0 %162
        %v164 = vsel %vm138, %v160, 0.0
        %165 = vadd.xlane.f32.xlu0 %v164
        %v166 = vpop.xlane.xlu0 %165
        %v167 = vmul.f32 %v163, %v157
        %v168 = vmul.f32 %v166, %v158
        %v169 = vlog2.pop %v153
        %v170 = vmul.f32 %v169, 0.6931472
        %v171 = vlog2.pop %v156
        %v172 = vmul.f32 %v171, 0.6931472
        %v173 = vsub.f32 %v167, %v170
        %v174 = vsub.f32 %v168, %v172
        %s175 = smul.u32 %s15, 16
        %v176 = vlaneseq
        %v177 = vshrl.u32 %v176, 7
        %v178 = vadd.s32 %v177, 8
        %v179 = vstv %s175
        %v180 = vadd.s32 %v179, %v177
        %v181 = vadd.s32 %v179, %v178
        %vm182 = vcmp.lt.s32.totalorder %v180, 40
        %vm183 = vcmp.lt.s32.totalorder %v181, 40
        %v184 = vsel %vm182, %v173, 0.0
        %v185 = vsel %vm183, %v174, 0.0
        %vm186 = vcmask 7168
        %v187 = vsel %vm186, %v184, 0.0
        %v188 = vsel %vm186, %v185, 0.0
        %v189 = vadd.f32 %v187, %v188
        %190 = vadd.xlane.f32.xlu0 %v189
        %v191 = vpop.xlane.xlu0 %190
        %v192 = vrot.slane %v191, 4
        %v193 = vadd.f32 %v191, %v192
        %v194 = vrot.slane %v193, 2
        %v195 = vadd.f32 %v193, %v194
        %v196 = vrot.slane %v195, 1
        %v197 = vadd.f32 %v195, %v196
        %s198 = vtos %v197
        %v199 = vstv %s198
        %200 = vst [vmem:[%s121] sm:$0x1] %v199
        %s201 = sand.u32 %s49, 1
        %s202 = scalar_lea.sflag [#allocation3], %s201
        %s203 = sand.u32 %s49, 1
        %s204 = scalar_lea.vmem [#allocation2], %s203
        // Predicated region
        $region25: #{tpu_custom_call.1} parent=23 // pred_check
          %p205 = pneg %p59
        $region26: #{tpu_custom_call.1} parent=23 // pred_check_branch
          %207 = sbr.rel (%p205) target = $region28
        $region27: #{tpu_custom_call.1} parent=23 // pred_region
          %s209 = ssub.s32 16, 16
          %210 = vsyncadd %s202, %s209
          %s211 = smul.addr %s15, 16
          %s212 = scalar_lea.hbm %s1, %s211
          %s214 = sshll.u32 %s204, 4
          %s215 = int_to_ptr.vmem [resolvable:$true] %s214
          %217 = dma.vmem_to_hbm [thread:$0]  %s215, 16, %s212, %s202
        $region28: #{tpu_custom_call.1} parent=23 // pred_fallthru
          _
      $region24: #{tpu_custom_call.1} parent=5 // pred_fallthru
        _
      %p218 = scmp.le.s32.totalorder 2, %s10
      // Predicated region
      $region29: #{tpu_custom_call.1} parent=5 // pred_check
        %p219 = pneg %p218
      $region30: #{tpu_custom_call.1} parent=5 // pred_check_branch
        %221 = sbr.rel (%p219) target = $region32
      $region31: #{tpu_custom_call.1} parent=5 // pred_region
        %s222 = ssub.s32 %s10, 2
        // Predicated region
        $region33: #{tpu_custom_call.1} parent=31 // pred_check
          %p223 = pneg %p65
        $region34: #{tpu_custom_call.1} parent=31 // pred_check_branch
          %225 = sbr.rel (%p223) target = $region36
        $region35: #{tpu_custom_call.1} parent=31 // pred_region
          %s226 = sand.u32 %s50, 1
          %s227 = scalar_lea.sflag [#allocation3], %s226
          %s228 = sand.u32 %s50, 1
          %s229 = scalar_lea.vmem [#allocation2], %s228
          %230 = dma.done %s227, 16
        $region36: #{tpu_custom_call.1} parent=31 // pred_fallthru
          _
      $region32: #{tpu_custom_call.1} parent=5 // pred_fallthru
        _
    $region6: #{tpu_custom_call.1} parent=1 // loop_footer
      %s14 = sadd.s32 1, %s10
    $region7: #{tpu_custom_call.1} parent=1 // loop_footer_branch
      %9 = sbr.rel target = $region3
    $region8: #{tpu_custom_call.1} parent=1 // loop_exit
      _
    %231 = vsyncpa [#allocation3], 1
    %s232 = scalar_lea.sflag [#allocation3], 1
    %233 = vsyncpa %s232, 1

</llo_original>
